<compile_context>
chip_gen: v6e
topology: v6e:2x2x1
jax: 0.10.0
libtpu: 0.0.40
codegen_flags: <defaults>
</compile_context>

<pallas_src>
import jax
import jax.numpy as jnp
from jax.experimental import pallas as pl
from jax.experimental.pallas import tpu as pltpu


def _round_up(x: int, m: int) -> int:
    return (x + m - 1) // m * m


def _cdiv(a: int, b: int) -> int:
    return -(-a // b)


def _fused_pattern_flow_kernel(x_ref, w1_ref, b1_ref, w2_ref, b2_ref,
                               w3_ref, b3_ref, w4_ref, b4_ref, o_ref):
    """One row-tile of flow_net(pattern_net(x)); both 2-layer SiLU MLPs fully fused.

    MXU operands are bf16 (native on v5e/v6e/v7x) with f32 accumulation via
    preferred_element_type; all element-wise work (bias add, SiLU) stays in f32.
    """
    x = x_ref[...].astype(jnp.bfloat16)

    def silu(h):
        # Exact SiLU: single EUP logistic per element (matches PyTorch nn.SiLU).
        return h * jax.nn.sigmoid(h)

    # pattern_net: Linear -> SiLU -> Linear
    h = jnp.dot(x, w1_ref[...], preferred_element_type=jnp.float32) + b1_ref[...]
    h = silu(h).astype(jnp.bfloat16)
    bundle = jnp.dot(h, w2_ref[...], preferred_element_type=jnp.float32) + b2_ref[...]

    # flow_net consumes the VMEM/vreg-resident intermediate; it never touches HBM.
    h = jnp.dot(bundle.astype(jnp.bfloat16), w3_ref[...],
                preferred_element_type=jnp.float32) + b3_ref[...]
    h = silu(h).astype(jnp.bfloat16)
    evolved = jnp.dot(h, w4_ref[...], preferred_element_type=jnp.float32) + b4_ref[...]

    o_ref[...] = evolved.astype(o_ref.dtype)


def prepare_kernel_params(params):
    """One-time weight preparation (hoisted out of the per-call wrapper).

    * Casts matmul weights to bf16 (MXU-native), keeps biases in f32 (row vectors).
    * Pads the output feature dim to a multiple of 128 only when the padding is cheap
      (pad <= manifold_dim). For small manifold_dim the kernel writes the unpadded block
      instead of amplifying the HBM-bound output stream.
    """
    w1, b1, w2, b2 = params["pattern_net"]
    w3, b3, w4, b4 = params["flow_net"]
    md = int(w1.shape[0])
    hidden = int(w1.shape[1])

    md_pad = _round_up(md, 128)
    if md_pad - md > md:          # padding would more than double the output stream
        md_pad = md
    pad_f = md_pad - md
    if pad_f:
        # Exact zero-padding: extra output lanes are identically zero (zero weight
        # columns + zero bias) and the extra rows of w3 multiply those zero lanes.
        w2 = jnp.pad(w2, ((0, 0), (0, pad_f)))
        b2 = jnp.pad(b2, ((0, pad_f),))
        w3 = jnp.pad(w3, ((0, pad_f), (0, 0)))
        w4 = jnp.pad(w4, ((0, 0), (0, pad_f)))
        b4 = jnp.pad(b4, ((0, pad_f),))

    return {
        "md": md, "md_pad": md_pad, "hidden": hidden,
        "w1": w1.astype(jnp.bfloat16), "b1": b1.astype(jnp.float32)[None, :],
        "w2": w2.astype(jnp.bfloat16), "b2": b2.astype(jnp.float32)[None, :],
        "w3": w3.astype(jnp.bfloat16), "b3": b3.astype(jnp.float32)[None, :],
        "w4": w4.astype(jnp.bfloat16), "b4": b4.astype(jnp.float32)[None, :],
    }


def _mlp_math(x, p):
    """Plain-XLA path (same bf16-dot / f32-accumulate math as the kernel)."""
    def silu(h):
        return h * jax.nn.sigmoid(h)

    def dot(a, w):
        return jnp.dot(a.astype(jnp.bfloat16), w, preferred_element_type=jnp.float32)

    bundle = dot(silu(dot(x, p["w1"]) + p["b1"]), p["w2"]) + p["b2"]
    out = dot(silu(dot(bundle, p["w3"]) + p["b3"]), p["w4"]) + p["b4"]
    return out


def pattern_processor_forward(x, params=None, *, prepared=None, block_rows: int = 2048,
                              use_pallas=None, interpret: bool = False):
    """formation = flow_net(pattern_net(x)) for x of shape [..., manifold_dim]."""
    if prepared is None:
        prepared = prepare_kernel_params(params)

    orig_shape = x.shape
    md, md_pad, hidden = prepared["md"], prepared["md_pad"], prepared["hidden"]
    assert int(orig_shape[-1]) == md, (orig_shape, md)

    rows = 1
    for d in orig_shape[:-1]:
        rows *= int(d)
    if rows == 0:                      # empty leading dims: nothing to compute
        return jnp.zeros(orig_shape, x.dtype)

    if use_pallas is None:
        # Tiny inputs: fixed pallas_call launch overhead beats the sub-us of work.
        use_pallas = rows >= 1024
    if not use_pallas:
        out = _mlp_math(x, prepared)[..., :md]
        return out.astype(x.dtype)

    x2 = x.reshape(rows, md)

    # Row tile: big for streaming efficiency, capped so (a) there are >= 2 grid steps to
    # shard across v7x's 2 TensorCores (one extra step is ~free on v5e/v6e), and (b) the
    # double-buffered x/out tiles plus f32 activations stay well inside scoped VMEM.
    # The row count is NOT padded: grid uses cdiv and Pallas masks the ragged last block.
    rows8 = _round_up(rows, 8)
    tm = min(block_rows, max(8, _round_up(_cdiv(rows8, 2), 8)))
    bytes_per_row = 4 * (2 * md + 2 * md_pad + 2 * hidden + md_pad)
    vmem_rows = max(8, (24 * 1024 * 1024 // max(bytes_per_row, 1)) // 8 * 8)
    tm = min(tm, vmem_rows)
    grid = (_cdiv(rows, tm),)

    const = lambda i: (0, 0)           # weights/biases resident: same block every step

    out = pl.pallas_call(
        _fused_pattern_flow_kernel,
        out_shape=jax.ShapeDtypeStruct((rows, md_pad), x.dtype),
        grid_spec=pltpu.PrefetchScalarGridSpec(
            num_scalar_prefetch=0,
            grid=grid,
            in_specs=[
                pl.BlockSpec((tm, md), lambda i: (i, 0)),      # streamed rows of x
                pl.BlockSpec(tuple(prepared["w1"].shape), const),
                pl.BlockSpec(tuple(prepared["b1"].shape), const),
                pl.BlockSpec(tuple(prepared["w2"].shape), const),
                pl.BlockSpec(tuple(prepared["b2"].shape), const),
                pl.BlockSpec(tuple(prepared["w3"].shape), const),
                pl.BlockSpec(tuple(prepared["b3"].shape), const),
                pl.BlockSpec(tuple(prepared["w4"].shape), const),
                pl.BlockSpec(tuple(prepared["b4"].shape), const),
            ],
            out_specs=pl.BlockSpec((tm, md_pad), lambda i: (i, 0)),
        ),
        compiler_params=pltpu.CompilerParams(
            dimension_semantics=("parallel",),   # row tiles shard across v7x's 2 TCs
            vmem_limit_bytes=32 * 1024 * 1024,
        ),
        interpret=interpret,
    )(x2, prepared["w1"], prepared["b1"], prepared["w2"], prepared["b2"],
      prepared["w3"], prepared["b3"], prepared["w4"], prepared["b4"])

    if md_pad != md:                   # only when lane-padding was actually applied
        out = out[:, :md]
    return out.reshape(orig_shape)


def init_params(key, manifold_dim: int, hidden_dim: int, dtype=jnp.float32):
    """Mirror _initialize_networks (PyTorch nn.Linear default uniform init)."""
    def linear(k, fan_in, fan_out):
        kw, kb = jax.random.split(k)
        bound = 1.0 / (fan_in ** 0.5)
        w = jax.random.uniform(kw, (fan_in, fan_out), dtype, -bound, bound)
        b = jax.random.uniform(kb, (fan_out,), dtype, -bound, bound)
        return w, b

    keys = jax.random.split(key, 6)
    w1, b1 = linear(keys[0], manifold_dim, hidden_dim)
    w2, b2 = linear(keys[1], hidden_dim, manifold_dim)
    w3, b3 = linear(keys[2], manifold_dim, hidden_dim)
    w4, b4 = linear(keys[3], hidden_dim, manifold_dim)
    qw1, qb1 = linear(keys[4], 2 * hidden_dim, hidden_dim)
    qw2, qb2 = linear(keys[5], hidden_dim, manifold_dim)
    return {
        "pattern_net": (w1, b1, w2, b2),
        "flow_net": (w3, b3, w4, b4),
        # Built to mirror the module, deliberately NOT fed to pallas_call (unused inputs
        # with BlockSpecs would still be DMA'd and double-buffered).
        "quantum_net": (qw1, qb1, qw2, qb2),  # TODO(synk): quantum bridge path is external
    }


def _reference(x, params):
    """Pure-JAX reference mirroring the kernel's bf16-dot / f32-accumulate math."""
    def silu(h):
        return h * jax.nn.sigmoid(h)

    def dot(a, w):
        return jnp.dot(a.astype(jnp.bfloat16), w.astype(jnp.bfloat16),
                       preferred_element_type=jnp.float32)

    w1, b1, w2, b2 = params["pattern_net"]
    w3, b3, w4, b4 = params["flow_net"]
    bundle = dot(silu(dot(x, w1) + b1), w2) + b2
    return dot(silu(dot(bundle, w3) + b3), w4) + b4


if __name__ == "__main__":
    manifold_dim = 16
    hidden_dim = 32
    batch, seq = 2, 8

    key = jax.random.PRNGKey(0)
    kx, kx2, kp = jax.random.split(key, 3)
    x = jax.random.normal(kx, (batch, seq, manifold_dim), dtype=jnp.float32)
    params = init_params(kp, manifold_dim, hidden_dim)
    prepared = prepare_kernel_params(params)    # hoisted one-time weight prep

    # Force the Pallas path (the auto heuristic would route 16 rows to plain XLA).
    out = pattern_processor_forward(x, prepared=prepared, use_pallas=True)
    out = jax.block_until_ready(out)
    assert out.shape == x.shape, (out.shape, x.shape)
    max_err = float(jnp.max(jnp.abs(out - _reference(x, params))))
    if max_err > 1e-2:
        raise AssertionError(f"kernel/reference mismatch: max abs err = {max_err}")

    # Ragged row count (not a multiple of the tile or of 8) exercises the masked last block.
    x_ragged = jax.random.normal(kx2, (2, 13, manifold_dim), dtype=jnp.float32)
    out_r = jax.block_until_ready(
        pattern_processor_forward(x_ragged, prepared=prepared, use_pallas=True))
    err_r = float(jnp.max(jnp.abs(out_r - _reference(x_ragged, params))))
    if err_r > 1e-2:
        raise AssertionError(f"ragged kernel/reference mismatch: max abs err = {err_r}")

    print("KERNEL_OK")
</pallas_src>

<mosaic_0001>
module attributes {stable_mosaic.version = 11 : i64} {
  func.func @_fused_pattern_flow_kernel(%arg0: i32, %arg1: memref<8x16xf32, #tpu.memory_space<vmem>>, %arg2: memref<16x32xbf16, #tpu.memory_space<vmem>>, %arg3: memref<1x32xf32, #tpu.memory_space<vmem>>, %arg4: memref<32x16xbf16, #tpu.memory_space<vmem>>, %arg5: memref<1x16xf32, #tpu.memory_space<vmem>>, %arg6: memref<16x32xbf16, #tpu.memory_space<vmem>>, %arg7: memref<1x32xf32, #tpu.memory_space<vmem>>, %arg8: memref<32x16xbf16, #tpu.memory_space<vmem>>, %arg9: memref<1x16xf32, #tpu.memory_space<vmem>>, %arg10: memref<8x16xf32, #tpu.memory_space<vmem>>) attributes {dimension_semantics = [#tpu.dimension_semantics<parallel>], iteration_bounds = array<i64: 2>, scalar_prefetch = 0 : i64, scratch_operands = 0 : i64, tpu.core_type = #tpu.core_type<tc>, window_params = [{transform_indices = @transform_0, window_bounds = array<i64: 8, 16>}, {pipeline_mode = #tpu.pipeline_mode<synchronous>, transform_indices = @transform_1, window_bounds = array<i64: 16, 32>}, {pipeline_mode = #tpu.pipeline_mode<synchronous>, transform_indices = @transform_2, window_bounds = array<i64: 1, 32>}, {pipeline_mode = #tpu.pipeline_mode<synchronous>, transform_indices = @transform_3, window_bounds = array<i64: 32, 16>}, {pipeline_mode = #tpu.pipeline_mode<synchronous>, transform_indices = @transform_4, window_bounds = array<i64: 1, 16>}, {pipeline_mode = #tpu.pipeline_mode<synchronous>, transform_indices = @transform_5, window_bounds = array<i64: 16, 32>}, {pipeline_mode = #tpu.pipeline_mode<synchronous>, transform_indices = @transform_6, window_bounds = array<i64: 1, 32>}, {pipeline_mode = #tpu.pipeline_mode<synchronous>, transform_indices = @transform_7, window_bounds = array<i64: 32, 16>}, {pipeline_mode = #tpu.pipeline_mode<synchronous>, transform_indices = @transform_8, window_bounds = array<i64: 1, 16>}, {transform_indices = @transform_9, window_bounds = array<i64: 8, 16>}]} {
    %c0 = arith.constant 0 : index
    %c0_0 = arith.constant 0 : index
    %0 = vector.load %arg1[%c0, %c0_0] : memref<8x16xf32, #tpu.memory_space<vmem>>, vector<8x16xf32>
    %1 = arith.truncf %0 : vector<8x16xf32> to vector<8x16xbf16>
    %c0_1 = arith.constant 0 : index
    %c0_2 = arith.constant 0 : index
    %2 = vector.load %arg2[%c0_1, %c0_2] : memref<16x32xbf16, #tpu.memory_space<vmem>>, vector<16x32xbf16>
    %cst = arith.constant dense<0.000000e+00> : vector<8x32xf32>
    %3 = tpu.matmul %1, %2, %cst {dimension_numbers = #tpu.dot_dimension_numbers<[1], [0], [0], [1], [0, 0, 1, 1], [], []>} : vector<8x16xbf16>, vector<16x32xbf16>, vector<8x32xf32> -> vector<8x32xf32>
    %c0_3 = arith.constant 0 : index
    %c0_4 = arith.constant 0 : index
    %4 = vector.load %arg3[%c0_3, %c0_4] : memref<1x32xf32, #tpu.memory_space<vmem>>, vector<1x32xf32>
    %5 = vector.broadcast %4 : vector<1x32xf32> to vector<8x32xf32>
    %6 = arith.addf %3, %5 : vector<8x32xf32>
    %7 = arith.negf %6 : vector<8x32xf32>
    %8 = math.exp %7 : vector<8x32xf32>
    %cst_5 = arith.constant 1.000000e+00 : f32
    %9 = vector.broadcast %cst_5 : f32 to vector<8x32xf32>
    %10 = arith.addf %9, %8 : vector<8x32xf32>
    %11 = arith.divf %9, %10 : vector<8x32xf32>
    %12 = arith.mulf %6, %11 : vector<8x32xf32>
    %13 = arith.truncf %12 : vector<8x32xf32> to vector<8x32xbf16>
    %c0_6 = arith.constant 0 : index
    %c0_7 = arith.constant 0 : index
    %14 = vector.load %arg4[%c0_6, %c0_7] : memref<32x16xbf16, #tpu.memory_space<vmem>>, vector<32x16xbf16>
    %cst_8 = arith.constant dense<0.000000e+00> : vector<8x16xf32>
    %15 = tpu.matmul %13, %14, %cst_8 {dimension_numbers = #tpu.dot_dimension_numbers<[1], [0], [0], [1], [0, 0, 1, 1], [], []>} : vector<8x32xbf16>, vector<32x16xbf16>, vector<8x16xf32> -> vector<8x16xf32>
    %c0_9 = arith.constant 0 : index
    %c0_10 = arith.constant 0 : index
    %16 = vector.load %arg5[%c0_9, %c0_10] : memref<1x16xf32, #tpu.memory_space<vmem>>, vector<1x16xf32>
    %17 = vector.broadcast %16 : vector<1x16xf32> to vector<8x16xf32>
    %18 = arith.addf %15, %17 : vector<8x16xf32>
    %19 = arith.truncf %18 : vector<8x16xf32> to vector<8x16xbf16>
    %c0_11 = arith.constant 0 : index
    %c0_12 = arith.constant 0 : index
    %20 = vector.load %arg6[%c0_11, %c0_12] : memref<16x32xbf16, #tpu.memory_space<vmem>>, vector<16x32xbf16>
    %cst_13 = arith.constant dense<0.000000e+00> : vector<8x32xf32>
    %21 = tpu.matmul %19, %20, %cst_13 {dimension_numbers = #tpu.dot_dimension_numbers<[1], [0], [0], [1], [0, 0, 1, 1], [], []>} : vector<8x16xbf16>, vector<16x32xbf16>, vector<8x32xf32> -> vector<8x32xf32>
    %c0_14 = arith.constant 0 : index
    %c0_15 = arith.constant 0 : index
    %22 = vector.load %arg7[%c0_14, %c0_15] : memref<1x32xf32, #tpu.memory_space<vmem>>, vector<1x32xf32>
    %23 = vector.broadcast %22 : vector<1x32xf32> to vector<8x32xf32>
    %24 = arith.addf %21, %23 : vector<8x32xf32>
    %25 = arith.negf %24 : vector<8x32xf32>
    %26 = math.exp %25 : vector<8x32xf32>
    %cst_16 = arith.constant 1.000000e+00 : f32
    %27 = vector.broadcast %cst_16 : f32 to vector<8x32xf32>
    %28 = arith.addf %27, %26 : vector<8x32xf32>
    %29 = arith.divf %27, %28 : vector<8x32xf32>
    %30 = arith.mulf %24, %29 : vector<8x32xf32>
    %31 = arith.truncf %30 : vector<8x32xf32> to vector<8x32xbf16>
    %c0_17 = arith.constant 0 : index
    %c0_18 = arith.constant 0 : index
    %32 = vector.load %arg8[%c0_17, %c0_18] : memref<32x16xbf16, #tpu.memory_space<vmem>>, vector<32x16xbf16>
    %cst_19 = arith.constant dense<0.000000e+00> : vector<8x16xf32>
    %33 = tpu.matmul %31, %32, %cst_19 {dimension_numbers = #tpu.dot_dimension_numbers<[1], [0], [0], [1], [0, 0, 1, 1], [], []>} : vector<8x32xbf16>, vector<32x16xbf16>, vector<8x16xf32> -> vector<8x16xf32>
    %c0_20 = arith.constant 0 : index
    %c0_21 = arith.constant 0 : index
    %34 = vector.load %arg9[%c0_20, %c0_21] : memref<1x16xf32, #tpu.memory_space<vmem>>, vector<1x16xf32>
    %35 = vector.broadcast %34 : vector<1x16xf32> to vector<8x16xf32>
    %36 = arith.addf %33, %35 : vector<8x16xf32>
    %c0_22 = arith.constant 0 : index
    %c0_23 = arith.constant 0 : index
    %37 = vector.load %arg10[%c0_22, %c0_23] : memref<8x16xf32, #tpu.memory_space<vmem>>, vector<8x16xf32>
    tpu.vector_store %arg10[%c0_22, %c0_23], %36 {strides = array<i32>} : memref<8x16xf32, #tpu.memory_space<vmem>>, vector<8x16xf32>,
    return
  }
  func.func @transform_0(%arg0: i32) -> (i32, i32) {
    %c0_i32 = arith.constant 0 : i32
    %c0_i32_0 = arith.constant 0 : i32
    return %arg0, %c0_i32 : i32, i32
  }
  func.func @transform_1(%arg0: i32) -> (i32, i32) {
    %c0_i32 = arith.constant 0 : i32
    %c0_i32_0 = arith.constant 0 : i32
    %c0_i32_1 = arith.constant 0 : i32
    return %c0_i32, %c0_i32_0 : i32, i32
  }
  func.func @transform_2(%arg0: i32) -> (i32, i32) {
    %c0_i32 = arith.constant 0 : i32
    %c0_i32_0 = arith.constant 0 : i32
    %c0_i32_1 = arith.constant 0 : i32
    return %c0_i32, %c0_i32_0 : i32, i32
  }
  func.func @transform_3(%arg0: i32) -> (i32, i32) {
    %c0_i32 = arith.constant 0 : i32
    %c0_i32_0 = arith.constant 0 : i32
    %c0_i32_1 = arith.constant 0 : i32
    return %c0_i32, %c0_i32_0 : i32, i32
  }
  func.func @transform_4(%arg0: i32) -> (i32, i32) {
    %c0_i32 = arith.constant 0 : i32
    %c0_i32_0 = arith.constant 0 : i32
    %c0_i32_1 = arith.constant 0 : i32
    return %c0_i32, %c0_i32_0 : i32, i32
  }
  func.func @transform_5(%arg0: i32) -> (i32, i32) {
    %c0_i32 = arith.constant 0 : i32
    %c0_i32_0 = arith.constant 0 : i32
    %c0_i32_1 = arith.constant 0 : i32
    return %c0_i32, %c0_i32_0 : i32, i32
  }
  func.func @transform_6(%arg0: i32) -> (i32, i32) {
    %c0_i32 = arith.constant 0 : i32
    %c0_i32_0 = arith.constant 0 : i32
    %c0_i32_1 = arith.constant 0 : i32
    return %c0_i32, %c0_i32_0 : i32, i32
  }
  func.func @transform_7(%arg0: i32) -> (i32, i32) {
    %c0_i32 = arith.constant 0 : i32
    %c0_i32_0 = arith.constant 0 : i32
    %c0_i32_1 = arith.constant 0 : i32
    return %c0_i32, %c0_i32_0 : i32, i32
  }
  func.func @transform_8(%arg0: i32) -> (i32, i32) {
    %c0_i32 = arith.constant 0 : i32
    %c0_i32_0 = arith.constant 0 : i32
    %c0_i32_1 = arith.constant 0 : i32
    return %c0_i32, %c0_i32_0 : i32, i32
  }
  func.func @transform_9(%arg0: i32) -> (i32, i32) {
    %c0_i32 = arith.constant 0 : i32
    %c0_i32_0 = arith.constant 0 : i32
    return %arg0, %c0_i32 : i32, i32
  }
}

</mosaic_0001>

<llo_original>
// kernel: tpu_custom_call.1
$region0: #{tpu_custom_call.1}
  #allocation0 [shape = 'u32[]', space=smem, size = 0x4, offset = 0x4, fixed_abs, tag = 'smem constant byte address 0x4 - core index']
  #allocation1 [shape = 'u32[144,128]{1,0:T(1,128)}', space=vmem, size = 0x12000, scoped, tag = 'internal scratch']
  %s0 = inlined_call_operand.vmem [shape: f32[16,16], index: 0, kind: input, shape index: {}]
  %s1 = inlined_call_operand.vmem [shape: bf16[16,32], index: 1, kind: input, shape index: {}]
  %s2 = inlined_call_operand.vmem [shape: f32[1,32], index: 2, kind: input, shape index: {}]
  %s3 = inlined_call_operand.vmem [shape: bf16[32,16], index: 3, kind: input, shape index: {}]
  %s4 = inlined_call_operand.vmem [shape: f32[1,16], index: 4, kind: input, shape index: {}]
  %s5 = inlined_call_operand.vmem [shape: bf16[16,32], index: 5, kind: input, shape index: {}]
  %s6 = inlined_call_operand.vmem [shape: f32[1,32], index: 6, kind: input, shape index: {}]
  %s7 = inlined_call_operand.vmem [shape: bf16[32,16], index: 7, kind: input, shape index: {}]
  %s8 = inlined_call_operand.vmem [shape: f32[1,16], index: 8, kind: input, shape index: {}]
  %s9 = inlined_call_operand.hbm [shape: f32[16,16], index: 9, kind: output, shape index: {}]
  %s10 = sld [smem:[#allocation0]]
  $region69: #{tpu_custom_call.1} parent=0
    _
  %s12 = ssub.s32 1, %s10
  %s13 = scalar_select 0, %s12, %s10
  $region1: #{tpu_custom_call.1} parent=0
    #allocation2 [shape = 'u8[8192]{0}', space=vmem, size = 0x2000, scoped, tag = 'output window, operand 0']
    #allocation3 [shape = 's32[2]{0}', space=sflag, size = 0x8, scoped, tag = 'scoped memory for tpu_custom_call.1']
    %14 = vsyncpa [#allocation3], 0
    %s15 = scalar_lea.sflag [#allocation3], 1
    %16 = vsyncpa %s15, 0
    loop: start=0, step=1, limit=4
    $region2: #{tpu_custom_call.1} parent=1 // loop_pre_header
      _
    $region3: #{tpu_custom_call.1} parent=1 // loop_header
      %s18 = sphi 0, %s22
      %p19 = scmp.ge.s32.totalorder %s18, 4
      %s28 = sphi 0, %s30
      %s31 = sphi 0, %s28
      %s32 = sphi 0, %s31
      %s48 = sphi 0, %s32
      %s52 = sphi 0, %s52
      %s54 = sphi 0, %s52
      %s55 = sphi 0, %s54
      %s69 = sphi 0, %s55
      %s73 = sphi 0, %s73
      %s75 = sphi 0, %s73
      %s76 = sphi 0, %s75
      %s90 = sphi 0, %s76
      %s94 = sphi 0, %s94
      %s96 = sphi 0, %s94
      %s97 = sphi 0, %s96
      %s111 = sphi 0, %s97
      %s115 = sphi 0, %s115
      %s117 = sphi 0, %s115
      %s118 = sphi 0, %s117
      %s132 = sphi 0, %s118
      %s136 = sphi 0, %s136
      %s138 = sphi 0, %s136
      %s139 = sphi 0, %s138
      %s153 = sphi 0, %s139
      %s157 = sphi 0, %s157
      %s159 = sphi 0, %s157
      %s160 = sphi 0, %s159
      %s174 = sphi 0, %s160
      %s178 = sphi 0, %s178
      %s180 = sphi 0, %s178
      %s181 = sphi 0, %s180
      %s195 = sphi 0, %s181
      %s199 = sphi 0, %s199
      %s201 = sphi 0, %s199
      %s202 = sphi 0, %s201
      %s216 = sphi 0, %s202
      %s222 = sphi 0, %s224
      %s225 = sphi 0, %s222
      %s226 = sphi 0, %s225
      %s242 = sphi 0, %s226
    $region4: #{tpu_custom_call.1} parent=1 // loop_header_branch
      %21 = sbr.rel (%p19) target = $region8
    $region5: #{tpu_custom_call.1} parent=1 // loop_body
      %s23 = ssub.s32 %s18, 1
      %s24 = ssub.s32 %s18, 2
      %s25 = sadd.s32 %s18, 1
      %s26 = ssub.s32 %s18, %s25
      %p27 = scmp.eq.s32.totalorder %s26, 0
      %s29 = sadd.s32 %s28, 1
      %s30 = scalar_select %p27, %s28, %s29
      %p33 = pneg %p27
      %p34 = scmp.eq.s32.totalorder %s18, 1
      %p35 = por %p33, %p34
      %p36 = scmp.ne.s32.totalorder %s28, %s31
      %p37 = scmp.eq.s32.totalorder %s18, 0
      %p38 = por %p36, %p37
      %p39 = scmp.ne.s32.totalorder %s28, %s31
      %p40 = scmp.eq.s32.totalorder %s23, 1
      %p41 = por %p39, %p40
      %p42 = scmp.ne.s32.totalorder %s31, %s32
      %p43 = scmp.eq.s32.totalorder %s23, 0
      %p44 = por %p42, %p43
      %p45 = scmp.ne.s32.totalorder %s31, %s32
      %p46 = scmp.eq.s32.totalorder %s24, 1
      %p47 = por %p45, %p46
      %p49 = scmp.ne.s32.totalorder %s32, %s48
      %p50 = scmp.eq.s32.totalorder %s24, 0
      %p51 = por %p49, %p50
      %s53 = sadd.s32 %s52, 1
      %p56 = scmp.eq.s32.totalorder %s18, 1
      %p57 = scmp.ne.s32.totalorder %s52, %s54
      %p58 = scmp.eq.s32.totalorder %s18, 0
      %p59 = por %p57, %p58
      %p60 = scmp.ne.s32.totalorder %s52, %s54
      %p61 = scmp.eq.s32.totalorder %s23, 1
      %p62 = por %p60, %p61
      %p63 = scmp.ne.s32.totalorder %s54, %s55
      %p64 = scmp.eq.s32.totalorder %s23, 0
      %p65 = por %p63, %p64
      %p66 = scmp.ne.s32.totalorder %s54, %s55
      %p67 = scmp.eq.s32.totalorder %s24, 1
      %p68 = por %p66, %p67
      %p70 = scmp.ne.s32.totalorder %s55, %s69
      %p71 = scmp.eq.s32.totalorder %s24, 0
      %p72 = por %p70, %p71
      %s74 = sadd.s32 %s73, 1
      %p77 = scmp.eq.s32.totalorder %s18, 1
      %p78 = scmp.ne.s32.totalorder %s73, %s75
      %p79 = scmp.eq.s32.totalorder %s18, 0
      %p80 = por %p78, %p79
      %p81 = scmp.ne.s32.totalorder %s73, %s75
      %p82 = scmp.eq.s32.totalorder %s23, 1
      %p83 = por %p81, %p82
      %p84 = scmp.ne.s32.totalorder %s75, %s76
      %p85 = scmp.eq.s32.totalorder %s23, 0
      %p86 = por %p84, %p85
      %p87 = scmp.ne.s32.totalorder %s75, %s76
      %p88 = scmp.eq.s32.totalorder %s24, 1
      %p89 = por %p87, %p88
      %p91 = scmp.ne.s32.totalorder %s76, %s90
      %p92 = scmp.eq.s32.totalorder %s24, 0
      %p93 = por %p91, %p92
      %s95 = sadd.s32 %s94, 1
      %p98 = scmp.eq.s32.totalorder %s18, 1
      %p99 = scmp.ne.s32.totalorder %s94, %s96
      %p100 = scmp.eq.s32.totalorder %s18, 0
      %p101 = por %p99, %p100
      %p102 = scmp.ne.s32.totalorder %s94, %s96
      %p103 = scmp.eq.s32.totalorder %s23, 1
      %p104 = por %p102, %p103
      %p105 = scmp.ne.s32.totalorder %s96, %s97
      %p106 = scmp.eq.s32.totalorder %s23, 0
      %p107 = por %p105, %p106
      %p108 = scmp.ne.s32.totalorder %s96, %s97
      %p109 = scmp.eq.s32.totalorder %s24, 1
      %p110 = por %p108, %p109
      %p112 = scmp.ne.s32.totalorder %s97, %s111
      %p113 = scmp.eq.s32.totalorder %s24, 0
      %p114 = por %p112, %p113
      %s116 = sadd.s32 %s115, 1
      %p119 = scmp.eq.s32.totalorder %s18, 1
      %p120 = scmp.ne.s32.totalorder %s115, %s117
      %p121 = scmp.eq.s32.totalorder %s18, 0
      %p122 = por %p120, %p121
      %p123 = scmp.ne.s32.totalorder %s115, %s117
      %p124 = scmp.eq.s32.totalorder %s23, 1
      %p125 = por %p123, %p124
      %p126 = scmp.ne.s32.totalorder %s117, %s118
      %p127 = scmp.eq.s32.totalorder %s23, 0
      %p128 = por %p126, %p127
      %p129 = scmp.ne.s32.totalorder %s117, %s118
      %p130 = scmp.eq.s32.totalorder %s24, 1
      %p131 = por %p129, %p130
      %p133 = scmp.ne.s32.totalorder %s118, %s132
      %p134 = scmp.eq.s32.totalorder %s24, 0
      %p135 = por %p133, %p134
      %s137 = sadd.s32 %s136, 1
      %p140 = scmp.eq.s32.totalorder %s18, 1
      %p141 = scmp.ne.s32.totalorder %s136, %s138
      %p142 = scmp.eq.s32.totalorder %s18, 0
      %p143 = por %p141, %p142
      %p144 = scmp.ne.s32.totalorder %s136, %s138
      %p145 = scmp.eq.s32.totalorder %s23, 1
      %p146 = por %p144, %p145
      %p147 = scmp.ne.s32.totalorder %s138, %s139
      %p148 = scmp.eq.s32.totalorder %s23, 0
      %p149 = por %p147, %p148
      %p150 = scmp.ne.s32.totalorder %s138, %s139
      %p151 = scmp.eq.s32.totalorder %s24, 1
      %p152 = por %p150, %p151
      %p154 = scmp.ne.s32.totalorder %s139, %s153
      %p155 = scmp.eq.s32.totalorder %s24, 0
      %p156 = por %p154, %p155
      %s158 = sadd.s32 %s157, 1
      %p161 = scmp.eq.s32.totalorder %s18, 1
      %p162 = scmp.ne.s32.totalorder %s157, %s159
      %p163 = scmp.eq.s32.totalorder %s18, 0
      %p164 = por %p162, %p163
      %p165 = scmp.ne.s32.totalorder %s157, %s159
      %p166 = scmp.eq.s32.totalorder %s23, 1
      %p167 = por %p165, %p166
      %p168 = scmp.ne.s32.totalorder %s159, %s160
      %p169 = scmp.eq.s32.totalorder %s23, 0
      %p170 = por %p168, %p169
      %p171 = scmp.ne.s32.totalorder %s159, %s160
      %p172 = scmp.eq.s32.totalorder %s24, 1
      %p173 = por %p171, %p172
      %p175 = scmp.ne.s32.totalorder %s160, %s174
      %p176 = scmp.eq.s32.totalorder %s24, 0
      %p177 = por %p175, %p176
      %s179 = sadd.s32 %s178, 1
      %p182 = scmp.eq.s32.totalorder %s18, 1
      %p183 = scmp.ne.s32.totalorder %s178, %s180
      %p184 = scmp.eq.s32.totalorder %s18, 0
      %p185 = por %p183, %p184
      %p186 = scmp.ne.s32.totalorder %s178, %s180
      %p187 = scmp.eq.s32.totalorder %s23, 1
      %p188 = por %p186, %p187
      %p189 = scmp.ne.s32.totalorder %s180, %s181
      %p190 = scmp.eq.s32.totalorder %s23, 0
      %p191 = por %p189, %p190
      %p192 = scmp.ne.s32.totalorder %s180, %s181
      %p193 = scmp.eq.s32.totalorder %s24, 1
      %p194 = por %p192, %p193
      %p196 = scmp.ne.s32.totalorder %s181, %s195
      %p197 = scmp.eq.s32.totalorder %s24, 0
      %p198 = por %p196, %p197
      %s200 = sadd.s32 %s199, 1
      %p203 = scmp.eq.s32.totalorder %s18, 1
      %p204 = scmp.ne.s32.totalorder %s199, %s201
      %p205 = scmp.eq.s32.totalorder %s18, 0
      %p206 = por %p204, %p205
      %p207 = scmp.ne.s32.totalorder %s199, %s201
      %p208 = scmp.eq.s32.totalorder %s23, 1
      %p209 = por %p207, %p208
      %p210 = scmp.ne.s32.totalorder %s201, %s202
      %p211 = scmp.eq.s32.totalorder %s23, 0
      %p212 = por %p210, %p211
      %p213 = scmp.ne.s32.totalorder %s201, %s202
      %p214 = scmp.eq.s32.totalorder %s24, 1
      %p215 = por %p213, %p214
      %p217 = scmp.ne.s32.totalorder %s202, %s216
      %p218 = scmp.eq.s32.totalorder %s24, 0
      %p219 = por %p217, %p218
      %s220 = ssub.s32 %s18, %s25
      %p221 = scmp.eq.s32.totalorder %s220, 0
      %s223 = sadd.s32 %s222, 1
      %s224 = scalar_select %p221, %s222, %s223
      %p227 = pneg %p221
      %p228 = scmp.eq.s32.totalorder %s18, 1
      %p229 = por %p227, %p228
      %p230 = scmp.ne.s32.totalorder %s222, %s225
      %p231 = scmp.eq.s32.totalorder %s18, 0
      %p232 = por %p230, %p231
      %p233 = scmp.ne.s32.totalorder %s222, %s225
      %p234 = scmp.eq.s32.totalorder %s23, 1
      %p235 = por %p233, %p234
      %p236 = scmp.ne.s32.totalorder %s225, %s226
      %p237 = scmp.eq.s32.totalorder %s23, 0
      %p238 = por %p236, %p237
      %p239 = scmp.ne.s32.totalorder %s225, %s226
      %p240 = scmp.eq.s32.totalorder %s24, 1
      %p241 = por %p239, %p240
      %p243 = scmp.ne.s32.totalorder %s226, %s242
      %p244 = scmp.eq.s32.totalorder %s24, 0
      %p245 = por %p243, %p244
      %p246 = scmp.le.s32.totalorder 1, %s18
      %p247 = scmp.lt.s32.totalorder %s18, 3
      %p248 = pnand %p246, %p247
      %p249 = pneg %p248
      // Predicated region
      $region9: #{tpu_custom_call.1} parent=5 // pred_check
        _
      $region10: #{tpu_custom_call.1} parent=5 // pred_check_branch
        %251 = sbr.rel (%p248) target = $region12
      $region11: #{tpu_custom_call.1} parent=5 // pred_region
        %s252 = ssub.s32 %s18, 1
        // Predicated region
        $region13: #{tpu_custom_call.1} parent=11 // pred_check
          %p253 = pneg %p65
        $region14: #{tpu_custom_call.1} parent=11 // pred_check_branch
          %255 = sbr.rel (%p253) target = $region16
        $region15: #{tpu_custom_call.1} parent=11 // pred_region
          _
        $region16: #{tpu_custom_call.1} parent=11 // pred_fallthru
          _
        // Predicated region
        $region17: #{tpu_custom_call.1} parent=11 // pred_check
          %p256 = pneg %p86
        $region18: #{tpu_custom_call.1} parent=11 // pred_check_branch
          %258 = sbr.rel (%p256) target = $region20
        $region19: #{tpu_custom_call.1} parent=11 // pred_region
          _
        $region20: #{tpu_custom_call.1} parent=11 // pred_fallthru
          _
        // Predicated region
        $region21: #{tpu_custom_call.1} parent=11 // pred_check
          %p259 = pneg %p107
        $region22: #{tpu_custom_call.1} parent=11 // pred_check_branch
          %261 = sbr.rel (%p259) target = $region24
        $region23: #{tpu_custom_call.1} parent=11 // pred_region
          _
        $region24: #{tpu_custom_call.1} parent=11 // pred_fallthru
          _
        // Predicated region
        $region25: #{tpu_custom_call.1} parent=11 // pred_check
          %p262 = pneg %p128
        $region26: #{tpu_custom_call.1} parent=11 // pred_check_branch
          %264 = sbr.rel (%p262) target = $region28
        $region27: #{tpu_custom_call.1} parent=11 // pred_region
          _
        $region28: #{tpu_custom_call.1} parent=11 // pred_fallthru
          _
        // Predicated region
        $region29: #{tpu_custom_call.1} parent=11 // pred_check
          %p265 = pneg %p149
        $region30: #{tpu_custom_call.1} parent=11 // pred_check_branch
          %267 = sbr.rel (%p265) target = $region32
        $region31: #{tpu_custom_call.1} parent=11 // pred_region
          _
        $region32: #{tpu_custom_call.1} parent=11 // pred_fallthru
          _
        // Predicated region
        $region33: #{tpu_custom_call.1} parent=11 // pred_check
          %p268 = pneg %p170
        $region34: #{tpu_custom_call.1} parent=11 // pred_check_branch
          %270 = sbr.rel (%p268) target = $region36
        $region35: #{tpu_custom_call.1} parent=11 // pred_region
          _
        $region36: #{tpu_custom_call.1} parent=11 // pred_fallthru
          _
        // Predicated region
        $region37: #{tpu_custom_call.1} parent=11 // pred_check
          %p271 = pneg %p191
        $region38: #{tpu_custom_call.1} parent=11 // pred_check_branch
          %273 = sbr.rel (%p271) target = $region40
        $region39: #{tpu_custom_call.1} parent=11 // pred_region
          _
        $region40: #{tpu_custom_call.1} parent=11 // pred_fallthru
          _
        // Predicated region
        $region41: #{tpu_custom_call.1} parent=11 // pred_check
          %p274 = pneg %p212
        $region42: #{tpu_custom_call.1} parent=11 // pred_check_branch
          %276 = sbr.rel (%p274) target = $region44
        $region43: #{tpu_custom_call.1} parent=11 // pred_region
          _
        $region44: #{tpu_custom_call.1} parent=11 // pred_fallthru
          _
      $region12: #{tpu_custom_call.1} parent=5 // pred_fallthru
        _
      %p277 = scmp.lt.s32.totalorder %s18, 2
      // Predicated region
      $region45: #{tpu_custom_call.1} parent=5 // pred_check
        %p278 = pneg %p277
      $region46: #{tpu_custom_call.1} parent=5 // pred_check_branch
        %280 = sbr.rel (%p278) target = $region48
      $region47: #{tpu_custom_call.1} parent=5 // pred_region
        // Predicated region
        $region49: #{tpu_custom_call.1} parent=47 // pred_check
          %p281 = pneg %p38
        $region50: #{tpu_custom_call.1} parent=47 // pred_check_branch
          %283 = sbr.rel (%p281) target = $region52
        $region51: #{tpu_custom_call.1} parent=47 // pred_region
          %p284 = scmp.lt.s32.totalorder %s18, 1
          %s285 = scalar_select %p284, %s18, 1
          %s286 = smul.addr %s285, 8
          %s287 = scalar_lea.vmem %s0, %s286
        $region52: #{tpu_custom_call.1} parent=47 // pred_fallthru
          _
      $region48: #{tpu_custom_call.1} parent=5 // pred_fallthru
        _
      %p288 = scmp.le.s32.totalorder 1, %s18
      %p289 = scmp.lt.s32.totalorder %s18, 3
      %p290 = pnand %p288, %p289
      %p291 = pneg %p290
      // Predicated region
      $region53: #{tpu_custom_call.1} parent=5 // pred_check
        _
      $region54: #{tpu_custom_call.1} parent=5 // pred_check_branch
        %293 = sbr.rel (%p290) target = $region56
      $region55: #{tpu_custom_call.1} parent=5 // pred_region
        %s294 = ssub.s32 %s18, 1
        %p295 = scmp.lt.s32.totalorder %s23, 1
        %s296 = scalar_select %p295, %s23, 1
        %s297 = smul.addr %s296, 8
        %s298 = scalar_lea.vmem %s0, %s297
        %p299 = pneg %p44
        %p300 = pneg %p41
        %p301 = pneg %p65
        %p302 = pneg %p62
        %p303 = pneg %p86
        %p304 = pneg %p83
        %p305 = pneg %p107
        %p306 = pneg %p104
        %p307 = pneg %p128
        %p308 = pneg %p125
        %p309 = pneg %p149
        %p310 = pneg %p146
        %p311 = pneg %p170
        %p312 = pneg %p167
        %p313 = pneg %p191
        %p314 = pneg %p188
        %p315 = pneg %p212
        %p316 = pneg %p209
        %p317 = pneg %p238
        %p318 = pneg %p235
        %s319 = sand.u32 %s225, 1
        %s320 = scalar_lea.sflag [#allocation3], %s319
        %s321 = sand.u32 %s225, 1
        %s322 = smul.addr %s321, 8
        %s323 = scalar_lea.vmem [#allocation2], %s322
        %p324 = scmp.lt.s32.totalorder %s23, 1
        %s325 = scalar_select %p324, %s23, 1
        %s326 = smul.addr %s325, 8
        %s327 = scalar_lea.vmem %s0, %s326
        %v329 = vld [vmem:[%s327] sm:$0xff]
        %v330 = vpack.c.bf16 %v329, %v329
        %v331 = vld [vmem:[%s1] sm:$0xf]
        %v332 = vld [vmem:[%s1 + $0x4] sm:$0xf]
        %v333 = vld [vmem:[%s2] sm:$0x1]
        %v335 = vlaneseq
        %v336 = vshrl.u32 %v335, 7
        %v337 = vsub.s32 0, %v336
        %v338 = vrot.slane %v333, %v337
        %v342 = vunpack.c.l.b16 %v331
        %v343 = vunpack.c.l.b16 %v332
        %v344 = vpack.c.b16 %v343, %v342
        %vm346 = vcmask 130048
        %v348 = vsel %vm346, %v330, 0
        %350 = vmatprep.subr.bf16.mxu0 0
        %351 = vmatpush1.bf16.msra.mxu0 0
        %352 = vmatprep.subr.bf16.mxu0 0
        %353 = vmatpush1.bf16.msra.mxu0 0
        %354 = vmatprep.subr.bf16.mxu0 0
        %355 = vmatpush1.bf16.msra.mxu0 0
        %356 = vmatprep.subr.bf16.mxu0 0
        %357 = vmatpush1.bf16.msra.mxu0 0
        %358 = vmatprep.subr.bf16.mxu0 0
        %359 = vmatpush1.bf16.msra.mxu0 0
        %360 = vmatprep.subr.bf16.mxu0 0
        %361 = vmatpush1.bf16.msra.mxu0 0
        %362 = vmatprep.subr.bf16.mxu0 0
        %363 = vmatpush1.bf16.msra.mxu0 0
        %364 = vmatprep.subr.bf16.mxu0 0
        %365 = vmatpush1.bf16.msra.mxu0 %v344
        %366 = vmatprep.subr.bf16.mxu0 0
        %367 = vmatpush2.bf16.msra.mxu0 0
        %368 = vmatprep.subr.bf16.mxu0 0
        %369 = vmatpush2.bf16.msra.mxu0 0
        %370 = vmatprep.subr.bf16.mxu0 0
        %371 = vmatpush2.bf16.msra.mxu0 0
        %372 = vmatprep.subr.bf16.mxu0 0
        %373 = vmatpush2.bf16.msra.mxu0 0
        %374 = vmatprep.subr.bf16.mxu0 0
        %375 = vmatpush2.bf16.msra.mxu0 0
        %376 = vmatprep.subr.bf16.mxu0 0
        %377 = vmatpush2.bf16.msra.mxu0 0
        %378 = vmatprep.subr.bf16.mxu0 0
        %379 = vmatpush2.bf16.msra.mxu0 0
        %380 = vmatprep.subr.bf16.mxu0 0
        %381 = vmatpush2.bf16.msra.mxu0 0
        %382 = vmatprep.mubr.bf16.mxu0 0
        %383 = vmatmul.mubr.bf16.gmra.mxu0 %v348
        %v384 = vpop.f32.mrf.mxu0
        %v385 = vadd.f32 %v338, %v384
        %v386 = vpop.f32.mrf.mxu0
        %v387 = vpop.f32.mrf.mxu0
        %v388 = vpop.f32.mrf.mxu0
        %389 = vdwg.mxu0
        %v390 = vxor.u32 %v385, 2147483648
        %v391 = vmul.f32 %v390, 1.442695
        %v392 = vpow.pop %v391
        %v393 = vadd.f32 %v392, 1.0
        %v394 = vrcp.pop %v393
        %v395 = vmul.f32 1.0, %v394
        %v396 = vmul.f32 %v385, %v395
        %v397 = vpack.c.bf16 %v396, %v396
        %v398 = vld [vmem:[%s3] sm:$0xf]
        %v399 = vld [vmem:[%s3 + $0x4] sm:$0xf]
        %v400 = vld [vmem:[%s3 + $0x8] sm:$0xf]
        %v401 = vld [vmem:[%s3 + $0xc] sm:$0xf]
        %v402 = vld [vmem:[%s4] sm:$0x1]
        %v404 = vlaneseq
        %v405 = vshrl.u32 %v404, 7
        %v406 = vsub.s32 0, %v405
        %v407 = vrot.slane %v402, %v406
        %v413 = vunpack.c.l.b16 %v398
        %v414 = vunpack.c.l.b16 %v399
        %v415 = vunpack.c.l.b16 %v400
        %v416 = vunpack.c.l.b16 %v401
        %v417 = vpack.c.b16 %v414, %v413
        %v418 = vpack.c.b16 %v416, %v415
        %vm421 = vcmask 261120
        %v423 = vsel %vm421, %v397, 0
        %425 = vmatprep.subr.bf16.mxu0 0
        %426 = vmatpush1.bf16.msra.mxu0 0
        %427 = vmatprep.subr.bf16.mxu0 0
        %428 = vmatpush1.bf16.msra.mxu0 0
        %429 = vmatprep.subr.bf16.mxu0 0
        %430 = vmatpush1.bf16.msra.mxu0 0
        %431 = vmatprep.subr.bf16.mxu0 0
        %432 = vmatpush1.bf16.msra.mxu0 0
        %433 = vmatprep.subr.bf16.mxu0 0
        %434 = vmatpush1.bf16.msra.mxu0 0
        %435 = vmatprep.subr.bf16.mxu0 0
        %436 = vmatpush1.bf16.msra.mxu0 0
        %437 = vmatprep.subr.bf16.mxu0 0
        %438 = vmatpush1.bf16.msra.mxu0 %v418
        %439 = vmatprep.subr.bf16.mxu0 0
        %440 = vmatpush1.bf16.msra.mxu0 %v417
        %441 = vmatprep.subr.bf16.mxu0 0
        %442 = vmatpush2.bf16.msra.mxu0 0
        %443 = vmatprep.subr.bf16.mxu0 0
        %444 = vmatpush2.bf16.msra.mxu0 0
        %445 = vmatprep.subr.bf16.mxu0 0
        %446 = vmatpush2.bf16.msra.mxu0 0
        %447 = vmatprep.subr.bf16.mxu0 0
        %448 = vmatpush2.bf16.msra.mxu0 0
        %449 = vmatprep.subr.bf16.mxu0 0
        %450 = vmatpush2.bf16.msra.mxu0 0
        %451 = vmatprep.subr.bf16.mxu0 0
        %452 = vmatpush2.bf16.msra.mxu0 0
        %453 = vmatprep.subr.bf16.mxu0 0
        %454 = vmatpush2.bf16.msra.mxu0 0
        %455 = vmatprep.subr.bf16.mxu0 0
        %456 = vmatpush2.bf16.msra.mxu0 0
        %457 = vmatprep.mubr.bf16.mxu0 0
        %458 = vmatmul.mubr.bf16.gmra.mxu0 %v423
        %v459 = vpop.f32.mrf.mxu0
        %v460 = vadd.f32 %v407, %v459
        %v461 = vpop.f32.mrf.mxu0
        %v462 = vpop.f32.mrf.mxu0
        %v463 = vpop.f32.mrf.mxu0
        %464 = vdwg.mxu0
        %v465 = vpack.c.bf16 %v460, %v460
        %v466 = vld [vmem:[%s5] sm:$0xf]
        %v467 = vld [vmem:[%s5 + $0x4] sm:$0xf]
        %v468 = vld [vmem:[%s6] sm:$0x1]
        %v470 = vlaneseq
        %v471 = vshrl.u32 %v470, 7
        %v472 = vsub.s32 0, %v471
        %v473 = vrot.slane %v468, %v472
        %v477 = vunpack.c.l.b16 %v466
        %v478 = vunpack.c.l.b16 %v467
        %v479 = vpack.c.b16 %v478, %v477
        %v482 = vsel %vm346, %v465, 0
        %484 = vmatprep.subr.bf16.mxu0 0
        %485 = vmatpush1.bf16.msra.mxu0 0
        %486 = vmatprep.subr.bf16.mxu0 0
        %487 = vmatpush1.bf16.msra.mxu0 0
        %488 = vmatprep.subr.bf16.mxu0 0
        %489 = vmatpush1.bf16.msra.mxu0 0
        %490 = vmatprep.subr.bf16.mxu0 0
        %491 = vmatpush1.bf16.msra.mxu0 0
        %492 = vmatprep.subr.bf16.mxu0 0
        %493 = vmatpush1.bf16.msra.mxu0 0
        %494 = vmatprep.subr.bf16.mxu0 0
        %495 = vmatpush1.bf16.msra.mxu0 0
        %496 = vmatprep.subr.bf16.mxu0 0
        %497 = vmatpush1.bf16.msra.mxu0 0
        %498 = vmatprep.subr.bf16.mxu0 0
        %499 = vmatpush1.bf16.msra.mxu0 %v479
        %500 = vmatprep.subr.bf16.mxu0 0
        %501 = vmatpush2.bf16.msra.mxu0 0
        %502 = vmatprep.subr.bf16.mxu0 0
        %503 = vmatpush2.bf16.msra.mxu0 0
        %504 = vmatprep.subr.bf16.mxu0 0
        %505 = vmatpush2.bf16.msra.mxu0 0
        %506 = vmatprep.subr.bf16.mxu0 0
        %507 = vmatpush2.bf16.msra.mxu0 0
        %508 = vmatprep.subr.bf16.mxu0 0
        %509 = vmatpush2.bf16.msra.mxu0 0
        %510 = vmatprep.subr.bf16.mxu0 0
        %511 = vmatpush2.bf16.msra.mxu0 0
        %512 = vmatprep.subr.bf16.mxu0 0
        %513 = vmatpush2.bf16.msra.mxu0 0
        %514 = vmatprep.subr.bf16.mxu0 0
        %515 = vmatpush2.bf16.msra.mxu0 0
        %516 = vmatprep.mubr.bf16.mxu0 0
        %517 = vmatmul.mubr.bf16.gmra.mxu0 %v482
        %v518 = vpop.f32.mrf.mxu0
        %v519 = vadd.f32 %v473, %v518
        %v520 = vpop.f32.mrf.mxu0
        %v521 = vpop.f32.mrf.mxu0
        %v522 = vpop.f32.mrf.mxu0
        %523 = vdwg.mxu0
        %v524 = vxor.u32 %v519, 2147483648
        %v525 = vmul.f32 %v524, 1.442695
        %v526 = vpow.pop %v525
        %v527 = vadd.f32 %v526, 1.0
        %v528 = vrcp.pop %v527
        %v529 = vmul.f32 1.0, %v528
        %v530 = vmul.f32 %v519, %v529
        %v531 = vpack.c.bf16 %v530, %v530
        %v532 = vld [vmem:[%s7] sm:$0xf]
        %v533 = vld [vmem:[%s7 + $0x4] sm:$0xf]
        %v534 = vld [vmem:[%s7 + $0x8] sm:$0xf]
        %v535 = vld [vmem:[%s7 + $0xc] sm:$0xf]
        %v536 = vld [vmem:[%s8] sm:$0x1]
        %v538 = vlaneseq
        %v539 = vshrl.u32 %v538, 7
        %v540 = vsub.s32 0, %v539
        %v541 = vrot.slane %v536, %v540
        %v547 = vunpack.c.l.b16 %v532
        %v548 = vunpack.c.l.b16 %v533
        %v549 = vunpack.c.l.b16 %v534
        %v550 = vunpack.c.l.b16 %v535
        %v551 = vpack.c.b16 %v548, %v547
        %v552 = vpack.c.b16 %v550, %v549
        %v556 = vsel %vm421, %v531, 0
        %558 = vmatprep.subr.bf16.mxu0 0
        %559 = vmatpush1.bf16.msra.mxu0 0
        %560 = vmatprep.subr.bf16.mxu0 0
        %561 = vmatpush1.bf16.msra.mxu0 0
        %562 = vmatprep.subr.bf16.mxu0 0
        %563 = vmatpush1.bf16.msra.mxu0 0
        %564 = vmatprep.subr.bf16.mxu0 0
        %565 = vmatpush1.bf16.msra.mxu0 0
        %566 = vmatprep.subr.bf16.mxu0 0
        %567 = vmatpush1.bf16.msra.mxu0 0
        %568 = vmatprep.subr.bf16.mxu0 0
        %569 = vmatpush1.bf16.msra.mxu0 0
        %570 = vmatprep.subr.bf16.mxu0 0
        %571 = vmatpush1.bf16.msra.mxu0 %v552
        %572 = vmatprep.subr.bf16.mxu0 0
        %573 = vmatpush1.bf16.msra.mxu0 %v551
        %574 = vmatprep.subr.bf16.mxu0 0
        %575 = vmatpush2.bf16.msra.mxu0 0
        %576 = vmatprep.subr.bf16.mxu0 0
        %577 = vmatpush2.bf16.msra.mxu0 0
        %578 = vmatprep.subr.bf16.mxu0 0
        %579 = vmatpush2.bf16.msra.mxu0 0
        %580 = vmatprep.subr.bf16.mxu0 0
        %581 = vmatpush2.bf16.msra.mxu0 0
        %582 = vmatprep.subr.bf16.mxu0 0
        %583 = vmatpush2.bf16.msra.mxu0 0
        %584 = vmatprep.subr.bf16.mxu0 0
        %585 = vmatpush2.bf16.msra.mxu0 0
        %586 = vmatprep.subr.bf16.mxu0 0
        %587 = vmatpush2.bf16.msra.mxu0 0
        %588 = vmatprep.subr.bf16.mxu0 0
        %589 = vmatpush2.bf16.msra.mxu0 0
        %590 = vmatprep.mubr.bf16.mxu0 0
        %591 = vmatmul.mubr.bf16.gmra.mxu0 %v556
        %v592 = vpop.f32.mrf.mxu0
        %v593 = vadd.f32 %v541, %v592
        %v594 = vpop.f32.mrf.mxu0
        %v595 = vpop.f32.mrf.mxu0
        %v596 = vpop.f32.mrf.mxu0
        %597 = vdwg.mxu0
        %598 = vst.msk [vmem:[%s323] sm:$0xff] %vm346, %v593
        %s599 = sand.u32 %s225, 1
        %s600 = scalar_lea.sflag [#allocation3], %s599
        %s601 = sand.u32 %s225, 1
        %s602 = smul.addr %s601, 8
        %s603 = scalar_lea.vmem [#allocation2], %s602
        // Predicated region
        $region57: #{tpu_custom_call.1} parent=55 // pred_check
          %p604 = pneg %p235
        $region58: #{tpu_custom_call.1} parent=55 // pred_check_branch
          %606 = sbr.rel (%p604) target = $region60
        $region59: #{tpu_custom_call.1} parent=55 // pred_region
          %s608 = ssub.s32 128, 128
          %609 = vsyncadd %s600, %s608
          %s610 = smul.addr %s23, 128
          %s611 = scalar_lea.hbm %s9, %s610
          %s613 = sshll.u32 %s603, 4
          %s614 = int_to_ptr.vmem [resolvable:$true] %s613
          %616 = dma.vmem_to_hbm [thread:$0]  %s614, 128, %s611, %s600
        $region60: #{tpu_custom_call.1} parent=55 // pred_fallthru
          _
      $region56: #{tpu_custom_call.1} parent=5 // pred_fallthru
        _
      %p617 = scmp.le.s32.totalorder 2, %s18
      // Predicated region
      $region61: #{tpu_custom_call.1} parent=5 // pred_check
        %p618 = pneg %p617
      $region62: #{tpu_custom_call.1} parent=5 // pred_check_branch
        %620 = sbr.rel (%p618) target = $region64
      $region63: #{tpu_custom_call.1} parent=5 // pred_region
        %s621 = ssub.s32 %s18, 2
        // Predicated region
        $region65: #{tpu_custom_call.1} parent=63 // pred_check
          %p622 = pneg %p241
        $region66: #{tpu_custom_call.1} parent=63 // pred_check_branch
          %624 = sbr.rel (%p622) target = $region68
        $region67: #{tpu_custom_call.1} parent=63 // pred_region
          %s625 = sand.u32 %s226, 1
          %s626 = scalar_lea.sflag [#allocation3], %s625
          %s627 = sand.u32 %s226, 1
          %s628 = smul.addr %s627, 8
          %s629 = scalar_lea.vmem [#allocation2], %s628
          %630 = dma.done %s626, 128
        $region68: #{tpu_custom_call.1} parent=63 // pred_fallthru
          _
      $region64: #{tpu_custom_call.1} parent=5 // pred_fallthru
        _
    $region6: #{tpu_custom_call.1} parent=1 // loop_footer
      %s22 = sadd.s32 1, %s18
    $region7: #{tpu_custom_call.1} parent=1 // loop_footer_branch
      %17 = sbr.rel target = $region3
    $region8: #{tpu_custom_call.1} parent=1 // loop_exit
      _
    %631 = vsyncpa [#allocation3], 1
    %s632 = scalar_lea.sflag [#allocation3], 1
    %633 = vsyncpa %s632, 1

</llo_original>
